<compile_context>
chip_gen: v7x
topology: tpu7x:2x2x1
jax: 0.10.0
libtpu: 0.0.40
codegen_flags: <defaults>
</compile_context>

<pallas_src>
import jax
import jax.numpy as jnp
from jax import lax
from jax.experimental import pallas as pl
from jax.experimental.pallas import tpu as pltpu


def _convt_bn_relu_kernel(w_ref, scale_ref, shift_ref, x_ref, o_ref):
    """Fused ConvTranspose-GEMM + BatchNorm affine + ReLU for one tile.

    w_ref:     (tns, Cin)     rows j = (co, p, q) of the transposed weight
    scale_ref: (tns, 1)       gamma / sqrt(var + eps)   (broadcast over lanes)
    shift_ref: (tns, 1)       beta - mean * scale
    x_ref:     (1, Cin, thw)  input pixels of one batch element
    o_ref:     (1, tns, thw)
    """
    y = jnp.dot(w_ref[...], x_ref[0], preferred_element_type=jnp.float32)
    o_ref[0] = jnp.maximum(y * scale_ref[...] + shift_ref[...], 0.0).astype(o_ref.dtype)


def decoder_block(x_nchw, w, gamma, beta, stride, eps=1e-3,
                  compute_dtype=jnp.float32):
    """ConvTranspose2d(k=s, stride=s, bias=False) -> BatchNorm2d(train) -> ReLU."""
    N, Cin, H, W = x_nchw.shape
    Cin_w, Cout, kh, kw = w.shape
    assert Cin == Cin_w and kh == stride and kw == stride
    s = stride
    HW = H * W
    Ns = Cout * s * s            # GEMM rows per batch element: (co, p, q)
    M = N * HW                   # samples contributing to every GEMM row

    x3 = x_nchw.reshape(N, Cin, HW)            # NCHW is contiguous: free reshape
    Wt = w.reshape(Cin, Ns).T                  # (Ns, Cin)

    # ---- BatchNorm2d batch statistics, analytically from the (small) input ----
    #   sx = sum_r x_r (Cin,),   G = sum_r x_r x_r^T (Cin, Cin)
    #   mu_j = Wt[j].sx / M,     SS_j = Wt[j]^T (G - sx sx^T / M) Wt[j]
    hi = lax.Precision.HIGHEST
    sx = jnp.sum(x3, axis=(0, 2))
    G = jnp.einsum('ncx,ndx->cd', x3, x3, precision=hi)
    Gc = G - jnp.outer(sx, sx) / M                                  # centered Gram
    mu_col = jnp.dot(Wt, sx, precision=hi) / M                      # (Ns,)
    ss_col = jnp.sum(Wt * jnp.dot(Wt, Gc, precision=hi), axis=1)    # (Ns,)
    # pool the s*s sub-pixel columns belonging to each output channel
    mu_ch = jnp.mean(mu_col.reshape(Cout, s * s), axis=1)           # (Cout,)
    within = jnp.sum(ss_col.reshape(Cout, s * s), axis=1)
    between = M * jnp.sum((mu_col.reshape(Cout, s * s) - mu_ch[:, None]) ** 2,
                          axis=1)
    var_ch = jnp.maximum(within + between, 0.0) / (M * s * s)       # biased var
    inv = gamma / jnp.sqrt(var_ch + eps)
    scale_col = jnp.repeat(inv, s * s).reshape(Ns, 1).astype(jnp.float32)
    shift_col = jnp.repeat(beta - mu_ch * inv, s * s).reshape(Ns, 1).astype(jnp.float32)

    # ---- fused GEMM + BN + ReLU: the big output is written exactly once -------
    tns = Ns if Ns <= 512 else 512             # full extent or multiple of 8
    thw = HW if HW <= 1024 else 1024           # full extent or multiple of 128
    grid = (N, pl.cdiv(HW, thw), pl.cdiv(Ns, tns))   # x tile stays resident over c

    wt_c = Wt.astype(compute_dtype)
    x3_c = x3.astype(compute_dtype)
    item = jnp.dtype(compute_dtype).itemsize
    cost = pl.CostEstimate(
        flops=2 * N * Ns * Cin * HW,
        transcendentals=0,
        bytes_accessed=int(N * Cin * HW * item + Ns * Cin * item
                           + 2 * Ns * 4 + N * Ns * HW * 4),
    )

    out3 = pl.pallas_call(
        _convt_bn_relu_kernel,
        out_shape=jax.ShapeDtypeStruct((N, Ns, HW), jnp.float32),
        grid=grid,
        in_specs=[
            pl.BlockSpec((tns, Cin), lambda n, h, c: (c, 0)),
            pl.BlockSpec((tns, 1), lambda n, h, c: (c, 0)),
            pl.BlockSpec((tns, 1), lambda n, h, c: (c, 0)),
            pl.BlockSpec((1, Cin, thw), lambda n, h, c: (n, 0, h)),
        ],
        out_specs=pl.BlockSpec((1, tns, thw), lambda n, h, c: (n, c, h)),
        compiler_params=pltpu.CompilerParams(
            dimension_semantics=("parallel", "parallel", "parallel"),
            vmem_limit_bytes=32 * 1024 * 1024),    # v7x-safe (64 MiB physical)
        cost_estimate=cost,
    )(wt_c, scale_col, shift_col, x3_c)

    if s == 1:
        return out3.reshape(N, Cout, H, W)         # already NCHW memory: free
    # TODO(synk): the s>1 sub-pixel interleave is a strided relayout that a
    # BlockSpec index_map cannot express lane-densely; done as one XLA transpose.
    out6 = out3.reshape(N, Cout, s, s, H, W)
    out6 = jnp.transpose(out6, (0, 1, 4, 2, 5, 3))
    return out6.reshape(N, Cout, H * s, W * s)


def fpn_decoder(xs, params, compute_dtype=jnp.float32):
    outs = [decoder_block(x, p["w"], p["gamma"], p["beta"], p["stride"],
                          compute_dtype=compute_dtype)
            for x, p in zip(xs, params)]
    return jnp.concatenate(outs, axis=1)


def _ref_block(x, w, gamma, beta, s, eps=1e-3):
    # Pure-JAX reference (ConvTranspose k=s,stride=s -> BN(train) -> ReLU).
    N, _, H, W = x.shape
    Co = w.shape[1]
    y = jnp.einsum('nchw,cokl->nohkwl', x, w).reshape(N, Co, H * s, W * s)
    mean = y.mean(axis=(0, 2, 3), keepdims=True)
    var = y.var(axis=(0, 2, 3), keepdims=True)
    yn = (y - mean) / jnp.sqrt(var + eps)
    yn = yn * gamma[None, :, None, None] + beta[None, :, None, None]
    return jnp.maximum(yn, 0.0)


if __name__ == "__main__":
    key = jax.random.PRNGKey(0)
    in_channels = (8, 16, 32)
    upsample_strides = (1, 2, 4)
    out_channels = (16, 16, 16)
    batch = 2
    spatial = [(16, 16), (8, 8), (4, 4)]   # every scale upsamples to 16x16

    xs, params = [], []
    for i, (cin, s, cout) in enumerate(zip(in_channels, upsample_strides, out_channels)):
        key, k1, k2 = jax.random.split(key, 3)
        H, W = spatial[i]
        xs.append(jax.random.normal(k1, (batch, cin, H, W), jnp.float32))
        # kaiming_normal_(mode='fan_out', nonlinearity='relu') on weight (Cin, Cout, k, k)
        fan_out = cin * s * s
        std = (2.0 / fan_out) ** 0.5
        w = std * jax.random.normal(k2, (cin, cout, s, s), jnp.float32)
        gamma = 1.0 + 0.1 * jnp.arange(cout, dtype=jnp.float32)
        beta = 0.05 * jnp.arange(cout, dtype=jnp.float32)
        params.append(dict(w=w, gamma=gamma, beta=beta, stride=s))

    out = jax.block_until_ready(fpn_decoder(xs, params))
    ref = jnp.concatenate(
        [_ref_block(x, p["w"], p["gamma"], p["beta"], p["stride"])
         for x, p in zip(xs, params)], axis=1)

    assert out.shape == (batch, sum(out_channels), 16, 16), out.shape
    max_err = float(jnp.max(jnp.abs(out - ref)))
    assert jnp.allclose(out, ref, atol=5e-4, rtol=5e-4), max_err
    print("KERNEL_OK")
</pallas_src>

<mosaic_0001>
module attributes {stable_mosaic.version = 11 : i64} {
  func.func @_convt_bn_relu_kernel(%arg0: i32, %arg1: i32, %arg2: i32, %arg3: memref<16x8xf32, #tpu.memory_space<vmem>>, %arg4: memref<16x1xf32, #tpu.memory_space<vmem>>, %arg5: memref<16x1xf32, #tpu.memory_space<vmem>>, %arg6: memref<1x8x256xf32, #tpu.memory_space<vmem>>, %arg7: memref<1x16x256xf32, #tpu.memory_space<vmem>>) attributes {dimension_semantics = [#tpu.dimension_semantics<parallel>, #tpu.dimension_semantics<parallel>, #tpu.dimension_semantics<parallel>], iteration_bounds = array<i64: 2, 1, 1>, scalar_prefetch = 0 : i64, scratch_operands = 0 : i64, tpu.core_type = #tpu.core_type<tc>, window_params = [{transform_indices = @transform_0, window_bounds = array<i64: 16, 8>}, {transform_indices = @transform_1, window_bounds = array<i64: 16, 1>}, {transform_indices = @transform_2, window_bounds = array<i64: 16, 1>}, {transform_indices = @transform_3, window_bounds = array<i64: 1, 8, 256>}, {transform_indices = @transform_4, window_bounds = array<i64: 1, 16, 256>}]} {
    %c0 = arith.constant 0 : index
    %c0_0 = arith.constant 0 : index
    %0 = vector.load %arg3[%c0, %c0_0] : memref<16x8xf32, #tpu.memory_space<vmem>>, vector<16x8xf32>
    %c0_1 = arith.constant 0 : index
    %c0_2 = arith.constant 0 : index
    %c0_3 = arith.constant 0 : index
    %1 = vector.load %arg6[%c0_1, %c0_2, %c0_3] : memref<1x8x256xf32, #tpu.memory_space<vmem>>, vector<1x8x256xf32>
    %2 = vector.shape_cast %1 : vector<1x8x256xf32> to vector<8x256xf32>
    %cst = arith.constant dense<0.000000e+00> : vector<16x256xf32>
    %3 = tpu.matmul %0, %2, %cst {dimension_numbers = #tpu.dot_dimension_numbers<[1], [0], [0], [1], [0, 0, 1, 1], [], []>} : vector<16x8xf32>, vector<8x256xf32>, vector<16x256xf32> -> vector<16x256xf32>
    %c0_4 = arith.constant 0 : index
    %c0_5 = arith.constant 0 : index
    %4 = vector.load %arg4[%c0_4, %c0_5] : memref<16x1xf32, #tpu.memory_space<vmem>>, vector<16x1xf32>
    %5 = vector.broadcast %4 : vector<16x1xf32> to vector<16x256xf32>
    %6 = arith.mulf %3, %5 : vector<16x256xf32>
    %c0_6 = arith.constant 0 : index
    %c0_7 = arith.constant 0 : index
    %7 = vector.load %arg5[%c0_6, %c0_7] : memref<16x1xf32, #tpu.memory_space<vmem>>, vector<16x1xf32>
    %8 = vector.broadcast %7 : vector<16x1xf32> to vector<16x256xf32>
    %9 = arith.addf %6, %8 : vector<16x256xf32>
    %cst_8 = arith.constant 0.000000e+00 : f32
    %10 = vector.broadcast %cst_8 : f32 to vector<16x256xf32>
    %11 = arith.maximumf %9, %10 : vector<16x256xf32>
    %c0_9 = arith.constant 0 : index
    %c0_10 = arith.constant 0 : index
    %c0_11 = arith.constant 0 : index
    %12 = vector.load %arg7[%c0_9, %c0_10, %c0_11] : memref<1x16x256xf32, #tpu.memory_space<vmem>>, vector<1x16x256xf32>
    %13 = vector.shape_cast %12 : vector<1x16x256xf32> to vector<16x256xf32>
    %14 = vector.shape_cast %11 : vector<16x256xf32> to vector<1x16x256xf32>
    tpu.vector_store %arg7[%c0_9, %c0_10, %c0_11], %14 {strides = array<i32>} : memref<1x16x256xf32, #tpu.memory_space<vmem>>, vector<1x16x256xf32>,
    return
  }
  func.func @transform_0(%arg0: i32, %arg1: i32, %arg2: i32) -> (i32, i32) {
    %c0_i32 = arith.constant 0 : i32
    %c0_i32_0 = arith.constant 0 : i32
    return %arg2, %c0_i32 : i32, i32
  }
  func.func @transform_1(%arg0: i32, %arg1: i32, %arg2: i32) -> (i32, i32) {
    %c0_i32 = arith.constant 0 : i32
    %c0_i32_0 = arith.constant 0 : i32
    return %arg2, %c0_i32 : i32, i32
  }
  func.func @transform_2(%arg0: i32, %arg1: i32, %arg2: i32) -> (i32, i32) {
    %c0_i32 = arith.constant 0 : i32
    %c0_i32_0 = arith.constant 0 : i32
    return %arg2, %c0_i32 : i32, i32
  }
  func.func @transform_3(%arg0: i32, %arg1: i32, %arg2: i32) -> (i32, i32, i32) {
    %c0_i32 = arith.constant 0 : i32
    %c0_i32_0 = arith.constant 0 : i32
    return %arg0, %c0_i32, %arg1 : i32, i32, i32
  }
  func.func @transform_4(%arg0: i32, %arg1: i32, %arg2: i32) -> (i32, i32, i32) {
    %c0_i32 = arith.constant 0 : i32
    return %arg0, %arg2, %arg1 : i32, i32, i32
  }
}

</mosaic_0001>

<llo_original>
// kernel: tpu_custom_call.1
$region0: #{tpu_custom_call.1}
  #allocation0 [shape = 'u32[]', space=smem, size = 0x4, offset = 0x4, fixed_abs, tag = 'smem constant byte address 0x4 - core index']
  #allocation1 [shape = 'u32[144,128]{1,0:T(1,128)}', space=vmem, size = 0x12000, scoped, tag = 'internal scratch']
  %s0 = inlined_call_operand.vmem [shape: f32[16,8], index: 0, kind: input, shape index: {}]
  %s1 = inlined_call_operand.vmem [shape: f32[16,1], index: 1, kind: input, shape index: {}]
  %s2 = inlined_call_operand.vmem [shape: f32[16,1], index: 2, kind: input, shape index: {}]
  %s3 = inlined_call_operand.vmem [shape: f32[2,8,256], index: 3, kind: input, shape index: {}]
  %s4 = inlined_call_operand.hbm [shape: f32[2,16,256], index: 4, kind: output, shape index: {}]
  %s5 = sld [smem:[#allocation0]]
  $region49: #{tpu_custom_call.1} parent=0
    _
  %s7 = ssub.s32 1, %s5
  %s8 = scalar_select 0, %s7, %s5
  $region1: #{tpu_custom_call.1} parent=0
    #allocation2 [shape = 'u8[32768]{0}', space=vmem, size = 0x8000, scoped, tag = 'output window, operand 0']
    #allocation3 [shape = 's32[2]{0}', space=sflag, size = 0x8, scoped, tag = 'scoped memory for tpu_custom_call.1']
    %9 = vsyncpa [#allocation3], 0
    %s10 = scalar_lea.sflag [#allocation3], 1
    %11 = vsyncpa %s10, 0
    loop: start=0, step=1, limit=4
    $region2: #{tpu_custom_call.1} parent=1 // loop_pre_header
      _
    $region3: #{tpu_custom_call.1} parent=1 // loop_header
      %s13 = sphi 0, %s17
      %p14 = scmp.ge.s32.totalorder %s13, 4
      %s20 = sphi 0, %s39
      %s21 = sphi 0, %s35
      %s22 = sphi 0, %s31
      %s23 = sphi 0, %s20
      %s24 = sphi 0, %s21
      %s25 = sphi 0, %s22
      %s26 = sphi 0, %s23
      %s27 = sphi 0, %s24
      %s28 = sphi 0, %s25
      %s42 = sphi 0, %s44
      %s45 = sphi 0, %s42
      %s46 = sphi 0, %s45
      %s62 = sphi 0, %s46
      %s68 = sphi 0, %s70
      %s71 = sphi 0, %s68
      %s72 = sphi 0, %s71
      %s88 = sphi 0, %s72
      %s94 = sphi 0, %s96
      %s97 = sphi 0, %s94
      %s98 = sphi 0, %s97
      %s114 = sphi 0, %s98
      %s122 = sphi 0, %s124
      %s125 = sphi 0, %s122
      %s126 = sphi 0, %s125
      %s142 = sphi 0, %s126
      %s152 = sphi 0, %s154
      %s155 = sphi 0, %s152
      %s156 = sphi 0, %s155
      %s172 = sphi 0, %s156
    $region4: #{tpu_custom_call.1} parent=1 // loop_header_branch
      %16 = sbr.rel (%p14) target = $region8
    $region5: #{tpu_custom_call.1} parent=1 // loop_body
      %s18 = ssub.s32 %s13, 1
      %s19 = ssub.s32 %s13, 2
      %s29 = sadd.s32 1, %s22
      %p30 = scmp.ge.s32.totalorder %s29, 1
      %s31 = scalar_select %p30, 0, %s29
      %s32 = sadd.s32 1, %s21
      %s33 = scalar_select %p30, %s32, %s21
      %p34 = scmp.ge.s32.totalorder %s33, 1
      %s35 = scalar_select %p34, 0, %s33
      %s36 = sadd.s32 1, %s20
      %s37 = scalar_select %p34, %s36, %s20
      %p38 = scmp.ge.s32.totalorder %s37, 2
      %s39 = scalar_select %p38, 0, %s37
      %s40 = ssub.s32 %s22, %s31
      %p41 = scmp.eq.s32.totalorder %s40, 0
      %s43 = sadd.s32 %s42, 1
      %s44 = scalar_select %p41, %s42, %s43
      %p47 = pneg %p41
      %p48 = scmp.eq.s32.totalorder %s13, 1
      %p49 = por %p47, %p48
      %p50 = scmp.ne.s32.totalorder %s42, %s45
      %p51 = scmp.eq.s32.totalorder %s13, 0
      %p52 = por %p50, %p51
      %p53 = scmp.ne.s32.totalorder %s42, %s45
      %p54 = scmp.eq.s32.totalorder %s18, 1
      %p55 = por %p53, %p54
      %p56 = scmp.ne.s32.totalorder %s45, %s46
      %p57 = scmp.eq.s32.totalorder %s18, 0
      %p58 = por %p56, %p57
      %p59 = scmp.ne.s32.totalorder %s45, %s46
      %p60 = scmp.eq.s32.totalorder %s19, 1
      %p61 = por %p59, %p60
      %p63 = scmp.ne.s32.totalorder %s46, %s62
      %p64 = scmp.eq.s32.totalorder %s19, 0
      %p65 = por %p63, %p64
      %s66 = ssub.s32 %s22, %s31
      %p67 = scmp.eq.s32.totalorder %s66, 0
      %s69 = sadd.s32 %s68, 1
      %s70 = scalar_select %p67, %s68, %s69
      %p73 = pneg %p67
      %p74 = scmp.eq.s32.totalorder %s13, 1
      %p75 = por %p73, %p74
      %p76 = scmp.ne.s32.totalorder %s68, %s71
      %p77 = scmp.eq.s32.totalorder %s13, 0
      %p78 = por %p76, %p77
      %p79 = scmp.ne.s32.totalorder %s68, %s71
      %p80 = scmp.eq.s32.totalorder %s18, 1
      %p81 = por %p79, %p80
      %p82 = scmp.ne.s32.totalorder %s71, %s72
      %p83 = scmp.eq.s32.totalorder %s18, 0
      %p84 = por %p82, %p83
      %p85 = scmp.ne.s32.totalorder %s71, %s72
      %p86 = scmp.eq.s32.totalorder %s19, 1
      %p87 = por %p85, %p86
      %p89 = scmp.ne.s32.totalorder %s72, %s88
      %p90 = scmp.eq.s32.totalorder %s19, 0
      %p91 = por %p89, %p90
      %s92 = ssub.s32 %s22, %s31
      %p93 = scmp.eq.s32.totalorder %s92, 0
      %s95 = sadd.s32 %s94, 1
      %s96 = scalar_select %p93, %s94, %s95
      %p99 = pneg %p93
      %p100 = scmp.eq.s32.totalorder %s13, 1
      %p101 = por %p99, %p100
      %p102 = scmp.ne.s32.totalorder %s94, %s97
      %p103 = scmp.eq.s32.totalorder %s13, 0
      %p104 = por %p102, %p103
      %p105 = scmp.ne.s32.totalorder %s94, %s97
      %p106 = scmp.eq.s32.totalorder %s18, 1
      %p107 = por %p105, %p106
      %p108 = scmp.ne.s32.totalorder %s97, %s98
      %p109 = scmp.eq.s32.totalorder %s18, 0
      %p110 = por %p108, %p109
      %p111 = scmp.ne.s32.totalorder %s97, %s98
      %p112 = scmp.eq.s32.totalorder %s19, 1
      %p113 = por %p111, %p112
      %p115 = scmp.ne.s32.totalorder %s98, %s114
      %p116 = scmp.eq.s32.totalorder %s19, 0
      %p117 = por %p115, %p116
      %s118 = ssub.s32 %s20, %s39
      %s119 = ssub.s32 %s21, %s35
      %s120 = sor.u32 %s118, %s119
      %p121 = scmp.eq.s32.totalorder %s120, 0
      %s123 = sadd.s32 %s122, 1
      %s124 = scalar_select %p121, %s122, %s123
      %p127 = pneg %p121
      %p128 = scmp.eq.s32.totalorder %s13, 1
      %p129 = por %p127, %p128
      %p130 = scmp.ne.s32.totalorder %s122, %s125
      %p131 = scmp.eq.s32.totalorder %s13, 0
      %p132 = por %p130, %p131
      %p133 = scmp.ne.s32.totalorder %s122, %s125
      %p134 = scmp.eq.s32.totalorder %s18, 1
      %p135 = por %p133, %p134
      %p136 = scmp.ne.s32.totalorder %s125, %s126
      %p137 = scmp.eq.s32.totalorder %s18, 0
      %p138 = por %p136, %p137
      %p139 = scmp.ne.s32.totalorder %s125, %s126
      %p140 = scmp.eq.s32.totalorder %s19, 1
      %p141 = por %p139, %p140
      %p143 = scmp.ne.s32.totalorder %s126, %s142
      %p144 = scmp.eq.s32.totalorder %s19, 0
      %p145 = por %p143, %p144
      %s146 = ssub.s32 %s20, %s39
      %s147 = ssub.s32 %s22, %s31
      %s148 = sor.u32 %s146, %s147
      %s149 = ssub.s32 %s21, %s35
      %s150 = sor.u32 %s148, %s149
      %p151 = scmp.eq.s32.totalorder %s150, 0
      %s153 = sadd.s32 %s152, 1
      %s154 = scalar_select %p151, %s152, %s153
      %p157 = pneg %p151
      %p158 = scmp.eq.s32.totalorder %s13, 1
      %p159 = por %p157, %p158
      %p160 = scmp.ne.s32.totalorder %s152, %s155
      %p161 = scmp.eq.s32.totalorder %s13, 0
      %p162 = por %p160, %p161
      %p163 = scmp.ne.s32.totalorder %s152, %s155
      %p164 = scmp.eq.s32.totalorder %s18, 1
      %p165 = por %p163, %p164
      %p166 = scmp.ne.s32.totalorder %s155, %s156
      %p167 = scmp.eq.s32.totalorder %s18, 0
      %p168 = por %p166, %p167
      %p169 = scmp.ne.s32.totalorder %s155, %s156
      %p170 = scmp.eq.s32.totalorder %s19, 1
      %p171 = por %p169, %p170
      %p173 = scmp.ne.s32.totalorder %s156, %s172
      %p174 = scmp.eq.s32.totalorder %s19, 0
      %p175 = por %p173, %p174
      %p176 = scmp.le.s32.totalorder 1, %s13
      %p177 = scmp.lt.s32.totalorder %s13, 3
      %p178 = pnand %p176, %p177
      %p179 = pneg %p178
      // Predicated region
      $region9: #{tpu_custom_call.1} parent=5 // pred_check
        _
      $region10: #{tpu_custom_call.1} parent=5 // pred_check_branch
        %181 = sbr.rel (%p178) target = $region12
      $region11: #{tpu_custom_call.1} parent=5 // pred_region
        %s182 = ssub.s32 %s13, 1
        // Predicated region
        $region13: #{tpu_custom_call.1} parent=11 // pred_check
          %p183 = pneg %p58
        $region14: #{tpu_custom_call.1} parent=11 // pred_check_branch
          %185 = sbr.rel (%p183) target = $region16
        $region15: #{tpu_custom_call.1} parent=11 // pred_region
          %s186 = smul.u32 2, %s25
          %p187 = scmp.lt.s32.totalorder %s186, 1
          %s188 = scalar_select %p187, %s186, 1
          %s189 = smul.addr %s188, 8
          %s190 = scalar_lea.vmem %s0, %s189
          %s191 = smul.u32 2, %s25
        $region16: #{tpu_custom_call.1} parent=11 // pred_fallthru
          _
        // Predicated region
        $region17: #{tpu_custom_call.1} parent=11 // pred_check
          %p192 = pneg %p84
        $region18: #{tpu_custom_call.1} parent=11 // pred_check_branch
          %194 = sbr.rel (%p192) target = $region20
        $region19: #{tpu_custom_call.1} parent=11 // pred_region
          %s195 = smul.u32 2, %s25
          %p196 = scmp.lt.s32.totalorder %s195, 1
          %s197 = scalar_select %p196, %s195, 1
          %s198 = smul.addr %s197, 8
          %s199 = scalar_lea.vmem %s1, %s198
          %s200 = smul.u32 2, %s25
        $region20: #{tpu_custom_call.1} parent=11 // pred_fallthru
          _
        // Predicated region
        $region21: #{tpu_custom_call.1} parent=11 // pred_check
          %p201 = pneg %p110
        $region22: #{tpu_custom_call.1} parent=11 // pred_check_branch
          %203 = sbr.rel (%p201) target = $region24
        $region23: #{tpu_custom_call.1} parent=11 // pred_region
          %s204 = smul.u32 2, %s25
          %p205 = scmp.lt.s32.totalorder %s204, 1
          %s206 = scalar_select %p205, %s204, 1
          %s207 = smul.addr %s206, 8
          %s208 = scalar_lea.vmem %s2, %s207
          %s209 = smul.u32 2, %s25
        $region24: #{tpu_custom_call.1} parent=11 // pred_fallthru
          _
      $region12: #{tpu_custom_call.1} parent=5 // pred_fallthru
        _
      %p210 = scmp.lt.s32.totalorder %s13, 2
      // Predicated region
      $region25: #{tpu_custom_call.1} parent=5 // pred_check
        %p211 = pneg %p210
      $region26: #{tpu_custom_call.1} parent=5 // pred_check_branch
        %213 = sbr.rel (%p211) target = $region28
      $region27: #{tpu_custom_call.1} parent=5 // pred_region
        // Predicated region
        $region29: #{tpu_custom_call.1} parent=27 // pred_check
          %p214 = pneg %p132
        $region30: #{tpu_custom_call.1} parent=27 // pred_check_branch
          %216 = sbr.rel (%p214) target = $region32
        $region31: #{tpu_custom_call.1} parent=27 // pred_region
          %s217 = smul.u32 2, %s21
          %p218 = scmp.lt.s32.totalorder %s20, 1
          %s219 = scalar_select %p218, %s20, 1
          %p220 = scmp.lt.s32.totalorder %s217, 1
          %s221 = scalar_select %p220, %s217, 1
          %s222 = smul.addr %s219, 2
          %s223 = sadd.s32 %s221, %s222
          %s224 = smul.addr %s223, 8
          %s225 = scalar_lea.vmem %s3, %s224
          %s226 = smul.u32 2, %s21
        $region32: #{tpu_custom_call.1} parent=27 // pred_fallthru
          _
      $region28: #{tpu_custom_call.1} parent=5 // pred_fallthru
        _
      %p227 = scmp.le.s32.totalorder 1, %s13
      %p228 = scmp.lt.s32.totalorder %s13, 3
      %p229 = pnand %p227, %p228
      %p230 = pneg %p229
      // Predicated region
      $region33: #{tpu_custom_call.1} parent=5 // pred_check
        _
      $region34: #{tpu_custom_call.1} parent=5 // pred_check_branch
        %232 = sbr.rel (%p229) target = $region36
      $region35: #{tpu_custom_call.1} parent=5 // pred_region
        %s233 = ssub.s32 %s13, 1
        %s234 = smul.u32 2, %s25
        %p235 = scmp.lt.s32.totalorder %s234, 1
        %s236 = scalar_select %p235, %s234, 1
        %s237 = smul.addr %s236, 8
        %s238 = scalar_lea.vmem %s0, %s237
        %p239 = pneg %p58
        %p240 = pneg %p55
        %s241 = smul.u32 2, %s25
        %p242 = scmp.lt.s32.totalorder %s241, 1
        %s243 = scalar_select %p242, %s241, 1
        %s244 = smul.addr %s243, 8
        %s245 = scalar_lea.vmem %s1, %s244
        %p246 = pneg %p84
        %p247 = pneg %p81
        %s248 = smul.u32 2, %s25
        %p249 = scmp.lt.s32.totalorder %s248, 1
        %s250 = scalar_select %p249, %s248, 1
        %s251 = smul.addr %s250, 8
        %s252 = scalar_lea.vmem %s2, %s251
        %p253 = pneg %p110
        %p254 = pneg %p107
        %s255 = smul.u32 2, %s24
        %p256 = scmp.lt.s32.totalorder %s23, 1
        %s257 = scalar_select %p256, %s23, 1
        %p258 = scmp.lt.s32.totalorder %s255, 1
        %s259 = scalar_select %p258, %s255, 1
        %s260 = smul.addr %s257, 2
        %s261 = sadd.s32 %s259, %s260
        %s262 = smul.addr %s261, 8
        %s263 = scalar_lea.vmem %s3, %s262
        %p264 = pneg %p138
        %p265 = pneg %p135
        %p266 = pneg %p168
        %p267 = pneg %p165
        %s268 = sand.u32 %s155, 1
        %s269 = scalar_lea.sflag [#allocation3], %s268
        %s270 = sand.u32 %s155, 1
        %s271 = smul.addr %s270, 32
        %s272 = scalar_lea.vmem [#allocation2], %s271
        %s273 = smul.u32 2, %s25
        %p274 = scmp.lt.s32.totalorder %s273, 1
        %s275 = scalar_select %p274, %s273, 1
        %s276 = smul.addr %s275, 8
        %s277 = scalar_lea.vmem %s0, %s276
        %s278 = smul.u32 2, %s25
        %s279 = smul.u32 2, %s25
        %p280 = scmp.lt.s32.totalorder %s279, 1
        %s281 = scalar_select %p280, %s279, 1
        %s282 = smul.addr %s281, 8
        %s283 = scalar_lea.vmem %s1, %s282
        %s284 = smul.u32 2, %s25
        %s285 = smul.u32 2, %s25
        %p286 = scmp.lt.s32.totalorder %s285, 1
        %s287 = scalar_select %p286, %s285, 1
        %s288 = smul.addr %s287, 8
        %s289 = scalar_lea.vmem %s2, %s288
        %s290 = smul.u32 2, %s25
        %s291 = smul.u32 2, %s24
        %p292 = scmp.lt.s32.totalorder %s23, 1
        %s293 = scalar_select %p292, %s23, 1
        %p294 = scmp.lt.s32.totalorder %s291, 1
        %s295 = scalar_select %p294, %s291, 1
        %s296 = smul.addr %s293, 2
        %s297 = sadd.s32 %s295, %s296
        %s298 = smul.addr %s297, 8
        %s299 = scalar_lea.vmem %s3, %s298
        %s300 = smul.u32 2, %s24
        %s301 = smul.u32 2, %s25
        %s302 = smul.u32 2, %s24
        %v303 = vld [vmem:[%s277] sm:$0xff]
        %v304 = vld [vmem:[%s277 + $0x8] sm:$0xff]
        %v305 = vld [vmem:[%s299] sm:$0xff]
        %v306 = vld [vmem:[%s299 + $0x8] sm:$0xff]
        %vm307 = vcmask 64512
        %v309 = vsel %vm307, %v303, 0
        %v312 = vsel %vm307, %v304, 0
        %314 = vmatprep.subr.mxu0 %v306
        %315 = vmatpush1.msra.mxu0 %v305
        %316 = vmatprep.subr.mxu0 0.0
        %317 = vmatpush1.msra.mxu0 0.0
        %318 = vmatprep.subr.mxu0 0.0
        %319 = vmatpush1.msra.mxu0 0.0
        %320 = vmatprep.subr.mxu0 0.0
        %321 = vmatpush1.msra.mxu0 0.0
        %322 = vmatprep.subr.mxu0 0.0
        %323 = vmatpush1.msra.mxu0 0.0
        %324 = vmatprep.subr.mxu0 0.0
        %325 = vmatpush1.msra.mxu0 0.0
        %326 = vmatprep.subr.mxu0 0.0
        %327 = vmatpush1.msra.mxu0 0.0
        %328 = vmatprep.subr.mxu0 0.0
        %329 = vmatpush1.msra.mxu0 0.0
        %330 = vmatprep.subr.mxu0 0.0
        %331 = vmatpush1.msra.mxu0 0.0
        %332 = vmatprep.subr.mxu0 0.0
        %333 = vmatpush1.msra.mxu0 0.0
        %334 = vmatprep.subr.mxu0 0.0
        %335 = vmatpush1.msra.mxu0 0.0
        %336 = vmatprep.subr.mxu0 0.0
        %337 = vmatpush1.msra.mxu0 0.0
        %338 = vmatprep.subr.mxu0 0.0
        %339 = vmatpush1.msra.mxu0 0.0
        %340 = vmatprep.subr.mxu0 0.0
        %341 = vmatpush1.msra.mxu0 0.0
        %342 = vmatprep.subr.mxu0 0.0
        %343 = vmatpush1.msra.mxu0 0.0
        %344 = vmatprep.subr.mxu0 0.0
        %345 = vmatpush1.msra.mxu0 0.0
        %346 = vmatprep.subr.mxu0 0.0
        %347 = vmatpush1.msra.mxu0 0.0
        %348 = vmatprep.subr.mxu0 0.0
        %349 = vmatpush1.msra.mxu0 0.0
        %350 = vmatprep.subr.mxu0 0.0
        %351 = vmatpush1.msra.mxu0 0.0
        %352 = vmatprep.subr.mxu0 0.0
        %353 = vmatpush1.msra.mxu0 0.0
        %354 = vmatprep.subr.mxu0 0.0
        %355 = vmatpush1.msra.mxu0 0.0
        %356 = vmatprep.subr.mxu0 0.0
        %357 = vmatpush1.msra.mxu0 0.0
        %358 = vmatprep.subr.mxu0 0.0
        %359 = vmatpush1.msra.mxu0 0.0
        %360 = vmatprep.subr.mxu0 0.0
        %361 = vmatpush1.msra.mxu0 0.0
        %362 = vmatprep.subr.mxu0 0.0
        %363 = vmatpush1.msra.mxu0 0.0
        %364 = vmatprep.subr.mxu0 0.0
        %365 = vmatpush1.msra.mxu0 0.0
        %366 = vmatprep.subr.mxu0 0.0
        %367 = vmatpush1.msra.mxu0 0.0
        %368 = vmatprep.subr.mxu0 0.0
        %369 = vmatpush1.msra.mxu0 0.0
        %370 = vmatprep.subr.mxu0 0.0
        %371 = vmatpush1.msra.mxu0 0.0
        %372 = vmatprep.subr.mxu0 0.0
        %373 = vmatpush1.msra.mxu0 0.0
        %374 = vmatprep.subr.mxu0 0.0
        %375 = vmatpush1.msra.mxu0 0.0
        %376 = vmatprep.subr.mxu0 0.0
        %377 = vmatpush1.msra.mxu0 0.0
        %378 = vmatprep.mubr.f32.mxu0 0.0
        %379 = vmatmul.mubr.f32.gmra.mrb[0].mxu0 %v309
        %v380 = vpop.f32.mrb[0].mxu0
        %v381 = vadd.f32 0.0, %v380
        %v382 = vpop.f32.mrb[0].mxu0
        %v383 = vadd.f32 0.0, %v382
        %384 = vmatprep.mubr.f32.mxu0 0.0
        %385 = vmatmul.mubr.f32.gmra.mrb[0].mxu0 %v312
        %v386 = vpop.f32.mrb[0].mxu0
        %v387 = vadd.f32 0.0, %v386
        %v388 = vpop.f32.mrb[0].mxu0
        %v389 = vadd.f32 0.0, %v388
        %390 = vdwg.mxu0
        %v391 = vld [vmem:[%s283] sm:$0xff]
        %v392 = vld [vmem:[%s283 + $0x8] sm:$0xff]
        %394 = vset.pattern.permute.xlu0 0
        %395 = vperm.xlu0 %394, %v391
        %v396 = vpop.permute.xlu0 %395
        %399 = vset.pattern.permute.xlu0 0
        %400 = vperm.xlu0 %399, %v392
        %v401 = vpop.permute.xlu0 %400
        %v403 = vmul.f32 %v381, %v396
        %v404 = vmul.f32 %v383, %v396
        %v405 = vmul.f32 %v387, %v401
        %v406 = vmul.f32 %v389, %v401
        %v407 = vld [vmem:[%s289] sm:$0xff]
        %v408 = vld [vmem:[%s289 + $0x8] sm:$0xff]
        %410 = vset.pattern.permute.xlu0 0
        %411 = vperm.xlu0 %410, %v407
        %v412 = vpop.permute.xlu0 %411
        %415 = vset.pattern.permute.xlu0 0
        %416 = vperm.xlu0 %415, %v408
        %v417 = vpop.permute.xlu0 %416
        %v419 = vadd.f32 %v403, %v412
        %v420 = vadd.f32 %v404, %v412
        %v421 = vadd.f32 %v405, %v417
        %v422 = vadd.f32 %v406, %v417
        %v423 = vmax.f32 %v419, 0.0
        %v424 = vmax.f32 %v420, 0.0
        %v425 = vmax.f32 %v421, 0.0
        %v426 = vmax.f32 %v422, 0.0
        %427 = vst [vmem:[%s272] sm:$0xff] %v423
        %428 = vst [vmem:[%s272 + $0x8] sm:$0xff] %v424
        %429 = vst [vmem:[%s272 + $0x10] sm:$0xff] %v425
        %430 = vst [vmem:[%s272 + $0x18] sm:$0xff] %v426
        %s431 = sand.u32 %s155, 1
        %s432 = scalar_lea.sflag [#allocation3], %s431
        %s433 = sand.u32 %s155, 1
        %s434 = smul.addr %s433, 32
        %s435 = scalar_lea.vmem [#allocation2], %s434
        // Predicated region
        $region37: #{tpu_custom_call.1} parent=35 // pred_check
          %p436 = pneg %p165
        $region38: #{tpu_custom_call.1} parent=35 // pred_check_branch
          %438 = sbr.rel (%p436) target = $region40
        $region39: #{tpu_custom_call.1} parent=35 // pred_region
          %s439 = smul.u32 2, %s25
          %s440 = smul.u32 2, %s24
          %s442 = ssub.s32 512, 512
          %443 = vsyncadd %s432, %s442
          %s444 = smul.addr %s439, 2
          %s445 = sadd.s32 %s440, %s444
          %s446 = smul.addr %s23, 4
          %s447 = sadd.s32 %s445, %s446
          %s448 = smul.addr %s447, 128
          %s449 = scalar_lea.hbm %s4, %s448
          %s450 = sshll.u32 %s435, 4
          %s451 = int_to_ptr.vmem [resolvable:$true] %s450
          %456 = dma.vmem_to_hbm [thread:$0]  %s451, 512, %s449, %s432, 256, 256, 16
        $region40: #{tpu_custom_call.1} parent=35 // pred_fallthru
          _
      $region36: #{tpu_custom_call.1} parent=5 // pred_fallthru
        _
      %p457 = scmp.le.s32.totalorder 2, %s13
      // Predicated region
      $region41: #{tpu_custom_call.1} parent=5 // pred_check
        %p458 = pneg %p457
      $region42: #{tpu_custom_call.1} parent=5 // pred_check_branch
        %460 = sbr.rel (%p458) target = $region44
      $region43: #{tpu_custom_call.1} parent=5 // pred_region
        %s461 = ssub.s32 %s13, 2
        // Predicated region
        $region45: #{tpu_custom_call.1} parent=43 // pred_check
          %p462 = pneg %p171
        $region46: #{tpu_custom_call.1} parent=43 // pred_check_branch
          %464 = sbr.rel (%p462) target = $region48
        $region47: #{tpu_custom_call.1} parent=43 // pred_region
          %s465 = sand.u32 %s156, 1
          %s466 = scalar_lea.sflag [#allocation3], %s465
          %s467 = sand.u32 %s156, 1
          %s468 = smul.addr %s467, 32
          %s469 = scalar_lea.vmem [#allocation2], %s468
          %470 = dma.done %s466, 512
        $region48: #{tpu_custom_call.1} parent=43 // pred_fallthru
          _
      $region44: #{tpu_custom_call.1} parent=5 // pred_fallthru
        _
    $region6: #{tpu_custom_call.1} parent=1 // loop_footer
      %s17 = sadd.s32 1, %s13
    $region7: #{tpu_custom_call.1} parent=1 // loop_footer_branch
      %12 = sbr.rel target = $region3
    $region8: #{tpu_custom_call.1} parent=1 // loop_exit
      _
    %471 = vsyncpa [#allocation3], 1
    %s472 = scalar_lea.sflag [#allocation3], 1
    %473 = vsyncpa %s472, 1

</llo_original>
